<compile_context>
chip_gen: v6e
topology: v6e:2x2x1
jax: 0.10.0
libtpu: 0.0.40
codegen_flags: <defaults>
</compile_context>

<pallas_src>
import jax
import jax.numpy as jnp
from jax.experimental import pallas as pl
from jax.experimental.pallas import tpu as pltpu


def _generator_mlp_kernel(z_ref, w1_ref, b1_ref, w2_ref, b2_ref, w3_ref, b3_ref,
                          out_ref):
    """Fused 3-layer MLP on one batch tile: relu(relu(z@W1+b1)@W2+b2)@W3+b3."""
    z = z_ref[...]                                            # (TB, L) f32
    # layer 1: bf16 MXU operands, f32 accumulation; bias/ReLU in f32
    h1 = jnp.dot(z.astype(jnp.bfloat16), w1_ref[...],
                 preferred_element_type=jnp.float32)
    h1 = jnp.maximum(h1 + b1_ref[...], 0.0)                   # (TB, F) f32
    # layer 2
    h2 = jnp.dot(h1.astype(jnp.bfloat16), w2_ref[...],
                 preferred_element_type=jnp.float32)
    h2 = jnp.maximum(h2 + b2_ref[...], 0.0)                   # (TB, F) f32
    # layer 3: output padded to 128 lanes -> unmasked lane-dense store
    out = jnp.dot(h2.astype(jnp.bfloat16), w3_ref[...],
                  preferred_element_type=jnp.float32)
    out_ref[...] = (out + b3_ref[...]).astype(out_ref.dtype)  # (TB, 128)


def generator_forward(z, params, *, out_features=2, block_batch=512):
    """Run the Generator MLP on latent batch z.

    z: (B, latent_size) float32
    params: dict with w1 (L,F) bf16, b1 (1,F) f32, w2 (F,F) bf16, b2 (1,F) f32,
            w3p (F,128) bf16 (zero-padded), b3p (1,128) f32 (zero-padded)
    returns: (B, out_features) float32
    """
    B, L = z.shape
    nout_pad = params["w3p"].shape[1]                 # 128 (lane-dense)

    # Pick a batch tile: whole batch if small, else 512-row tiles (mult. of 8)
    # with zero-padding of the trailing partial tile.
    if B <= block_batch:
        TB, Bp = B, B
        zp = z
    else:
        TB = block_batch
        Bp = -(-B // TB) * TB
        zp = z if Bp == B else jnp.pad(z, ((0, Bp - B), (0, 0)))

    replicated = lambda a: pl.BlockSpec(a.shape, lambda i: (0,) * a.ndim)
    inputs = (zp, params["w1"], params["b1"], params["w2"], params["b2"],
              params["w3p"], params["b3p"])
    in_specs = [pl.BlockSpec((TB, L), lambda i: (i, 0))] + \
               [replicated(a) for a in inputs[1:]]

    out_padded = pl.pallas_call(
        _generator_mlp_kernel,
        out_shape=jax.ShapeDtypeStruct((Bp, nout_pad), jnp.float32),
        grid=(Bp // TB,),
        in_specs=in_specs,
        out_specs=pl.BlockSpec((TB, nout_pad), lambda i: (i, 0)),
        compiler_params=pltpu.CompilerParams(
            dimension_semantics=("parallel",)),   # shards batch across TCs on v7x
    )(*inputs)
    return out_padded[:B, :out_features]


def init_generator_params(key, features, latent_size, out_features=2,
                          lane_pad=128):
    """nn.Linear-style init (U(-1/sqrt(in), 1/sqrt(in))); weights pre-transposed
    to (in, out), cast to bf16, and the final layer zero-padded to 128 lanes."""
    ks = jax.random.split(key, 6)

    def linear(kw, kb, fan_in, fan_out):
        bound = 1.0 / jnp.sqrt(jnp.float32(fan_in))
        w = jax.random.uniform(kw, (fan_in, fan_out), jnp.float32, -bound, bound)
        b = jax.random.uniform(kb, (1, fan_out), jnp.float32, -bound, bound)
        return w, b

    w1, b1 = linear(ks[0], ks[1], latent_size, features)
    w2, b2 = linear(ks[2], ks[3], features, features)
    w3, b3 = linear(ks[4], ks[5], features, out_features)

    # Lane-dense padding of the 2-wide final layer (padded columns exactly zero).
    w3p = jnp.zeros((features, lane_pad), jnp.float32).at[:, :out_features].set(w3)
    b3p = jnp.zeros((1, lane_pad), jnp.float32).at[:, :out_features].set(b3)

    return {
        "w1": w1.astype(jnp.bfloat16), "b1": b1,
        "w2": w2.astype(jnp.bfloat16), "b2": b2,
        "w3p": w3p.astype(jnp.bfloat16), "b3p": b3p,
    }


def _reference(z, params, out_features=2):
    """Plain-JAX reference with identical bf16-operand / f32-accum numerics."""
    bf = jnp.bfloat16
    h = jnp.maximum(jnp.dot(z.astype(bf), params["w1"],
                            preferred_element_type=jnp.float32) + params["b1"], 0.0)
    h = jnp.maximum(jnp.dot(h.astype(bf), params["w2"],
                            preferred_element_type=jnp.float32) + params["b2"], 0.0)
    o = jnp.dot(h.astype(bf), params["w3p"],
                preferred_element_type=jnp.float32) + params["b3p"]
    return o[:, :out_features]


if __name__ == "__main__":
    batch_size = 4
    features = 32
    latent_size = 4

    root = jax.random.PRNGKey(0)
    k_params, k_z, k_z_big = jax.random.split(root, 3)

    params = init_generator_params(k_params, features, latent_size)

    # Module-sized batch (z ~ N(0,1), the module's own "input").
    z = jax.random.normal(k_z, (batch_size, latent_size), jnp.float32)
    out = jax.block_until_ready(generator_forward(z, params))
    assert out.shape == (batch_size, 2)
    assert jnp.allclose(out, _reference(z, params), atol=1e-4, rtol=1e-4)

    # Larger batch exercises the row-tiled grid + trailing-tile padding path.
    z_big = jax.random.normal(k_z_big, (600, latent_size), jnp.float32)
    out_big = jax.block_until_ready(generator_forward(z_big, params))
    assert out_big.shape == (600, 2)
    assert jnp.allclose(out_big, _reference(z_big, params), atol=1e-4, rtol=1e-4)

    print("KERNEL_OK")
</pallas_src>

<mosaic_0001>
module attributes {stable_mosaic.version = 11 : i64} {
  func.func @_generator_mlp_kernel(%arg0: i32, %arg1: memref<4x4xf32, #tpu.memory_space<vmem>>, %arg2: memref<4x32xbf16, #tpu.memory_space<vmem>>, %arg3: memref<1x32xf32, #tpu.memory_space<vmem>>, %arg4: memref<32x32xbf16, #tpu.memory_space<vmem>>, %arg5: memref<1x32xf32, #tpu.memory_space<vmem>>, %arg6: memref<32x128xbf16, #tpu.memory_space<vmem>>, %arg7: memref<1x128xf32, #tpu.memory_space<vmem>>, %arg8: memref<4x128xf32, #tpu.memory_space<vmem>>) attributes {dimension_semantics = [#tpu.dimension_semantics<parallel>], iteration_bounds = array<i64: 1>, scalar_prefetch = 0 : i64, scratch_operands = 0 : i64, tpu.core_type = #tpu.core_type<tc>, window_params = [{transform_indices = @transform_0, window_bounds = array<i64: 4, 4>}, {pipeline_mode = #tpu.pipeline_mode<synchronous>, transform_indices = @transform_1, window_bounds = array<i64: 4, 32>}, {pipeline_mode = #tpu.pipeline_mode<synchronous>, transform_indices = @transform_2, window_bounds = array<i64: 1, 32>}, {pipeline_mode = #tpu.pipeline_mode<synchronous>, transform_indices = @transform_3, window_bounds = array<i64: 32, 32>}, {pipeline_mode = #tpu.pipeline_mode<synchronous>, transform_indices = @transform_4, window_bounds = array<i64: 1, 32>}, {pipeline_mode = #tpu.pipeline_mode<synchronous>, transform_indices = @transform_5, window_bounds = array<i64: 32, 128>}, {pipeline_mode = #tpu.pipeline_mode<synchronous>, transform_indices = @transform_6, window_bounds = array<i64: 1, 128>}, {transform_indices = @transform_7, window_bounds = array<i64: 4, 128>}]} {
    %c0 = arith.constant 0 : index
    %c0_0 = arith.constant 0 : index
    %0 = vector.load %arg1[%c0, %c0_0] : memref<4x4xf32, #tpu.memory_space<vmem>>, vector<4x4xf32>
    %1 = arith.truncf %0 : vector<4x4xf32> to vector<4x4xbf16>
    %c0_1 = arith.constant 0 : index
    %c0_2 = arith.constant 0 : index
    %2 = vector.load %arg2[%c0_1, %c0_2] : memref<4x32xbf16, #tpu.memory_space<vmem>>, vector<4x32xbf16>
    %cst = arith.constant dense<0.000000e+00> : vector<4x32xf32>
    %3 = tpu.matmul %1, %2, %cst {dimension_numbers = #tpu.dot_dimension_numbers<[1], [0], [0], [1], [0, 0, 1, 1], [], []>} : vector<4x4xbf16>, vector<4x32xbf16>, vector<4x32xf32> -> vector<4x32xf32>
    %c0_3 = arith.constant 0 : index
    %c0_4 = arith.constant 0 : index
    %4 = vector.load %arg3[%c0_3, %c0_4] : memref<1x32xf32, #tpu.memory_space<vmem>>, vector<1x32xf32>
    %5 = vector.broadcast %4 : vector<1x32xf32> to vector<4x32xf32>
    %6 = arith.addf %3, %5 : vector<4x32xf32>
    %cst_5 = arith.constant 0.000000e+00 : f32
    %7 = vector.broadcast %cst_5 : f32 to vector<4x32xf32>
    %8 = arith.maximumf %6, %7 : vector<4x32xf32>
    %9 = arith.truncf %8 : vector<4x32xf32> to vector<4x32xbf16>
    %c0_6 = arith.constant 0 : index
    %c0_7 = arith.constant 0 : index
    %10 = vector.load %arg4[%c0_6, %c0_7] : memref<32x32xbf16, #tpu.memory_space<vmem>>, vector<32x32xbf16>
    %cst_8 = arith.constant dense<0.000000e+00> : vector<4x32xf32>
    %11 = tpu.matmul %9, %10, %cst_8 {dimension_numbers = #tpu.dot_dimension_numbers<[1], [0], [0], [1], [0, 0, 1, 1], [], []>} : vector<4x32xbf16>, vector<32x32xbf16>, vector<4x32xf32> -> vector<4x32xf32>
    %c0_9 = arith.constant 0 : index
    %c0_10 = arith.constant 0 : index
    %12 = vector.load %arg5[%c0_9, %c0_10] : memref<1x32xf32, #tpu.memory_space<vmem>>, vector<1x32xf32>
    %13 = vector.broadcast %12 : vector<1x32xf32> to vector<4x32xf32>
    %14 = arith.addf %11, %13 : vector<4x32xf32>
    %cst_11 = arith.constant 0.000000e+00 : f32
    %15 = vector.broadcast %cst_11 : f32 to vector<4x32xf32>
    %16 = arith.maximumf %14, %15 : vector<4x32xf32>
    %17 = arith.truncf %16 : vector<4x32xf32> to vector<4x32xbf16>
    %c0_12 = arith.constant 0 : index
    %c0_13 = arith.constant 0 : index
    %18 = vector.load %arg6[%c0_12, %c0_13] : memref<32x128xbf16, #tpu.memory_space<vmem>>, vector<32x128xbf16>
    %cst_14 = arith.constant dense<0.000000e+00> : vector<4x128xf32>
    %19 = tpu.matmul %17, %18, %cst_14 {dimension_numbers = #tpu.dot_dimension_numbers<[1], [0], [0], [1], [0, 0, 1, 1], [], []>} : vector<4x32xbf16>, vector<32x128xbf16>, vector<4x128xf32> -> vector<4x128xf32>
    %c0_15 = arith.constant 0 : index
    %c0_16 = arith.constant 0 : index
    %20 = vector.load %arg7[%c0_15, %c0_16] : memref<1x128xf32, #tpu.memory_space<vmem>>, vector<1x128xf32>
    %21 = vector.broadcast %20 : vector<1x128xf32> to vector<4x128xf32>
    %22 = arith.addf %19, %21 : vector<4x128xf32>
    %c0_17 = arith.constant 0 : index
    %c0_18 = arith.constant 0 : index
    %23 = vector.load %arg8[%c0_17, %c0_18] : memref<4x128xf32, #tpu.memory_space<vmem>>, vector<4x128xf32>
    tpu.vector_store %arg8[%c0_17, %c0_18], %22 {strides = array<i32>} : memref<4x128xf32, #tpu.memory_space<vmem>>, vector<4x128xf32>,
    return
  }
  func.func @transform_0(%arg0: i32) -> (i32, i32) {
    %c0_i32 = arith.constant 0 : i32
    %c0_i32_0 = arith.constant 0 : i32
    return %arg0, %c0_i32 : i32, i32
  }
  func.func @transform_1(%arg0: i32) -> (i32, i32) {
    %c0_i32 = arith.constant 0 : i32
    %c0_i32_0 = arith.constant 0 : i32
    %c0_i32_1 = arith.constant 0 : i32
    return %c0_i32, %c0_i32_0 : i32, i32
  }
  func.func @transform_2(%arg0: i32) -> (i32, i32) {
    %c0_i32 = arith.constant 0 : i32
    %c0_i32_0 = arith.constant 0 : i32
    %c0_i32_1 = arith.constant 0 : i32
    return %c0_i32, %c0_i32_0 : i32, i32
  }
  func.func @transform_3(%arg0: i32) -> (i32, i32) {
    %c0_i32 = arith.constant 0 : i32
    %c0_i32_0 = arith.constant 0 : i32
    %c0_i32_1 = arith.constant 0 : i32
    return %c0_i32, %c0_i32_0 : i32, i32
  }
  func.func @transform_4(%arg0: i32) -> (i32, i32) {
    %c0_i32 = arith.constant 0 : i32
    %c0_i32_0 = arith.constant 0 : i32
    %c0_i32_1 = arith.constant 0 : i32
    return %c0_i32, %c0_i32_0 : i32, i32
  }
  func.func @transform_5(%arg0: i32) -> (i32, i32) {
    %c0_i32 = arith.constant 0 : i32
    %c0_i32_0 = arith.constant 0 : i32
    %c0_i32_1 = arith.constant 0 : i32
    return %c0_i32, %c0_i32_0 : i32, i32
  }
  func.func @transform_6(%arg0: i32) -> (i32, i32) {
    %c0_i32 = arith.constant 0 : i32
    %c0_i32_0 = arith.constant 0 : i32
    %c0_i32_1 = arith.constant 0 : i32
    return %c0_i32, %c0_i32_0 : i32, i32
  }
  func.func @transform_7(%arg0: i32) -> (i32, i32) {
    %c0_i32 = arith.constant 0 : i32
    %c0_i32_0 = arith.constant 0 : i32
    return %arg0, %c0_i32 : i32, i32
  }
}

</mosaic_0001>

<llo_original>
// kernel: tpu_custom_call.1
$region0: #{tpu_custom_call.1}
  #allocation0 [shape = 'u32[]', space=smem, size = 0x4, offset = 0x4, fixed_abs, tag = 'smem constant byte address 0x4 - core index']
  #allocation1 [shape = 'u32[144,128]{1,0:T(1,128)}', space=vmem, size = 0x12000, scoped, tag = 'internal scratch']
  %s0 = inlined_call_operand.hbm [shape: f32[4,4], index: 0, kind: input, shape index: {}]
  %s1 = inlined_call_operand.hbm [shape: bf16[4,32], index: 1, kind: input, shape index: {}]
  %s2 = inlined_call_operand.vmem [shape: f32[1,32], index: 2, kind: input, shape index: {}]
  %s3 = inlined_call_operand.hbm [shape: bf16[32,32], index: 3, kind: input, shape index: {}]
  %s4 = inlined_call_operand.vmem [shape: f32[1,32], index: 4, kind: input, shape index: {}]
  %s5 = inlined_call_operand.hbm [shape: bf16[32,128], index: 5, kind: input, shape index: {}]
  %s6 = inlined_call_operand.vmem [shape: f32[1,128], index: 6, kind: input, shape index: {}]
  %s7 = inlined_call_operand.hbm [shape: f32[4,128], index: 7, kind: output, shape index: {}]
  %s8 = sld [smem:[#allocation0]]
  $region54: #{tpu_custom_call.1} parent=0
    _
  %s10 = ssub.s32 1, %s8
  %s11 = scalar_select 0, %s10, %s8
  $region1: #{tpu_custom_call.1} parent=0
    #allocation2 [shape = 'u8[2048]{0}', space=vmem, size = 0x800, scoped, tag = 'input window, operand 0, single buffered']
    #allocation3 [shape = 's32[1]{0}', space=sflag, size = 0x4, scoped, tag = 'scoped memory for tpu_custom_call.1']
    #allocation4 [shape = 's32[1]{0}', space=sflag, size = 0x4, scoped, tag = 'scoped memory for tpu_custom_call.1']
    #allocation5 [shape = 'u8[1024]{0}', space=vmem, size = 0x400, scoped, tag = 'input window, operand 1, single buffered']
    #allocation6 [shape = 's32[1]{0}', space=sflag, size = 0x4, scoped, tag = 'scoped memory for tpu_custom_call.1']
    #allocation7 [shape = 'u8[8192]{0}', space=vmem, size = 0x2000, scoped, tag = 'input window, operand 3, single buffered']
    #allocation8 [shape = 'u8[8192]{0}', space=vmem, size = 0x2000, scoped, tag = 'input window, operand 5, single buffered']
    #allocation9 [shape = 's32[1]{0}', space=sflag, size = 0x4, scoped, tag = 'scoped memory for tpu_custom_call.1']
    #allocation10 [shape = 'u8[2048]{0}', space=vmem, size = 0x800, scoped, tag = 'output window, operand 0, single buffered']
    %12 = vsyncpa [#allocation3], 0
    %13 = vsyncpa [#allocation6], 0
    %14 = vsyncpa [#allocation9], 0
    %15 = vsyncpa [#allocation4], 0
    // Predicated region
    $region2: #{tpu_custom_call.1} parent=1 // pred_check
      _
    $region3: #{tpu_custom_call.1} parent=1 // pred_check_branch
      %17 = sbr.rel (0) target = $region5
    $region4: #{tpu_custom_call.1} parent=1 // pred_region
      %s19 = ssub.s32 64, 64
      %20 = vsyncadd [#allocation3], %s19
      %s22 = sshll.u32 [#allocation2], 4
      %s23 = int_to_ptr.vmem [resolvable:$true] %s22
      %25 = dma.hbm_to_vmem [thread:$0]  %s0, 64, %s23, [#allocation3]
    $region5: #{tpu_custom_call.1} parent=1 // pred_fallthru
      _
    // Predicated region
    $region6: #{tpu_custom_call.1} parent=1 // pred_check
      _
    $region7: #{tpu_custom_call.1} parent=1 // pred_check_branch
      %27 = sbr.rel (0) target = $region9
    $region8: #{tpu_custom_call.1} parent=1 // pred_region
      %s29 = ssub.s32 32, 32
      %30 = vsyncadd [#allocation6], %s29
      %s32 = sshll.u32 [#allocation5], 4
      %s33 = int_to_ptr.vmem [resolvable:$true] %s32
      %35 = dma.hbm_to_vmem [thread:$0]  %s1, 32, %s33, [#allocation6]
    $region9: #{tpu_custom_call.1} parent=1 // pred_fallthru
      _
    // Predicated region
    $region10: #{tpu_custom_call.1} parent=1 // pred_check
      _
    $region11: #{tpu_custom_call.1} parent=1 // pred_check_branch
      %37 = sbr.rel (0) target = $region13
    $region12: #{tpu_custom_call.1} parent=1 // pred_region
      _
    $region13: #{tpu_custom_call.1} parent=1 // pred_fallthru
      _
    // Predicated region
    $region14: #{tpu_custom_call.1} parent=1 // pred_check
      _
    $region15: #{tpu_custom_call.1} parent=1 // pred_check_branch
      %39 = sbr.rel (0) target = $region17
    $region16: #{tpu_custom_call.1} parent=1 // pred_region
      %s41 = ssub.s32 256, 256
      %42 = vsyncadd [#allocation6], %s41
      %s43 = sshll.u32 [#allocation7], 4
      %s44 = int_to_ptr.vmem [resolvable:$true] %s43
      %49 = dma.hbm_to_vmem [thread:$0]  %s3, 256, %s44, [#allocation6], 64, 64, 4
    $region17: #{tpu_custom_call.1} parent=1 // pred_fallthru
      _
    // Predicated region
    $region18: #{tpu_custom_call.1} parent=1 // pred_check
      _
    $region19: #{tpu_custom_call.1} parent=1 // pred_check_branch
      %51 = sbr.rel (0) target = $region21
    $region20: #{tpu_custom_call.1} parent=1 // pred_region
      _
    $region21: #{tpu_custom_call.1} parent=1 // pred_fallthru
      _
    // Predicated region
    $region22: #{tpu_custom_call.1} parent=1 // pred_check
      _
    $region23: #{tpu_custom_call.1} parent=1 // pred_check_branch
      %53 = sbr.rel (0) target = $region25
    $region24: #{tpu_custom_call.1} parent=1 // pred_region
      %s55 = ssub.s32 256, 256
      %56 = vsyncadd [#allocation9], %s55
      %s57 = sshll.u32 [#allocation8], 4
      %s58 = int_to_ptr.vmem [resolvable:$true] %s57
      %63 = dma.hbm_to_vmem [thread:$0]  %s5, 256, %s58, [#allocation9], 64, 64, 4
    $region25: #{tpu_custom_call.1} parent=1 // pred_fallthru
      _
    // Predicated region
    $region26: #{tpu_custom_call.1} parent=1 // pred_check
      _
    $region27: #{tpu_custom_call.1} parent=1 // pred_check_branch
      %65 = sbr.rel (0) target = $region29
    $region28: #{tpu_custom_call.1} parent=1 // pred_region
      _
    $region29: #{tpu_custom_call.1} parent=1 // pred_fallthru
      _
    // Predicated region
    $region30: #{tpu_custom_call.1} parent=1 // pred_check
      _
    $region31: #{tpu_custom_call.1} parent=1 // pred_check_branch
      %67 = sbr.rel (0) target = $region33
    $region32: #{tpu_custom_call.1} parent=1 // pred_region
      %68 = dma.done [#allocation3], 64
    $region33: #{tpu_custom_call.1} parent=1 // pred_fallthru
      _
    // Predicated region
    $region34: #{tpu_custom_call.1} parent=1 // pred_check
      _
    $region35: #{tpu_custom_call.1} parent=1 // pred_check_branch
      %70 = sbr.rel (0) target = $region37
    $region36: #{tpu_custom_call.1} parent=1 // pred_region
      %71 = dma.done [#allocation6], 32
    $region37: #{tpu_custom_call.1} parent=1 // pred_fallthru
      _
    // Predicated region
    $region38: #{tpu_custom_call.1} parent=1 // pred_check
      _
    $region39: #{tpu_custom_call.1} parent=1 // pred_check_branch
      %73 = sbr.rel (0) target = $region41
    $region40: #{tpu_custom_call.1} parent=1 // pred_region
      %74 = dma.done [#allocation6], 256
    $region41: #{tpu_custom_call.1} parent=1 // pred_fallthru
      _
    // Predicated region
    $region42: #{tpu_custom_call.1} parent=1 // pred_check
      _
    $region43: #{tpu_custom_call.1} parent=1 // pred_check_branch
      %76 = sbr.rel (0) target = $region45
    $region44: #{tpu_custom_call.1} parent=1 // pred_region
      %77 = dma.done [#allocation9], 256
    $region45: #{tpu_custom_call.1} parent=1 // pred_fallthru
      _
    %v79 = vld [vmem:[#allocation2] sm:$0xf]
    %v80 = vpack.c.bf16 %v79, %v79
    %v81 = vld [vmem:[#allocation5] sm:$0x3]
    %v82 = vld [vmem:[%s2] sm:$0x1]
    %v84 = vlaneseq
    %v85 = vshrl.u32 %v84, 7
    %v86 = vsub.s32 0, %v85
    %v87 = vrot.slane %v82, %v86
    %vm89 = vcmask 31744
    %v91 = vsel %vm89, %v80, 0
    %vm93 = vcmask 1041408
    %v95 = vsel %vm93, %v81, 0
    %97 = vmatprep.subr.bf16.mxu0 0
    %98 = vmatpush1.bf16.msra.mxu0 0
    %99 = vmatprep.subr.bf16.mxu0 0
    %100 = vmatpush1.bf16.msra.mxu0 0
    %101 = vmatprep.subr.bf16.mxu0 0
    %102 = vmatpush1.bf16.msra.mxu0 0
    %103 = vmatprep.subr.bf16.mxu0 0
    %104 = vmatpush1.bf16.msra.mxu0 0
    %105 = vmatprep.subr.bf16.mxu0 0
    %106 = vmatpush1.bf16.msra.mxu0 0
    %107 = vmatprep.subr.bf16.mxu0 0
    %108 = vmatpush1.bf16.msra.mxu0 0
    %109 = vmatprep.subr.bf16.mxu0 0
    %110 = vmatpush1.bf16.msra.mxu0 0
    %111 = vmatprep.subr.bf16.mxu0 0
    %112 = vmatpush1.bf16.msra.mxu0 %v95
    %113 = vmatprep.subr.bf16.mxu0 0
    %114 = vmatpush2.bf16.msra.mxu0 0
    %115 = vmatprep.subr.bf16.mxu0 0
    %116 = vmatpush2.bf16.msra.mxu0 0
    %117 = vmatprep.subr.bf16.mxu0 0
    %118 = vmatpush2.bf16.msra.mxu0 0
    %119 = vmatprep.subr.bf16.mxu0 0
    %120 = vmatpush2.bf16.msra.mxu0 0
    %121 = vmatprep.subr.bf16.mxu0 0
    %122 = vmatpush2.bf16.msra.mxu0 0
    %123 = vmatprep.subr.bf16.mxu0 0
    %124 = vmatpush2.bf16.msra.mxu0 0
    %125 = vmatprep.subr.bf16.mxu0 0
    %126 = vmatpush2.bf16.msra.mxu0 0
    %127 = vmatprep.subr.bf16.mxu0 0
    %128 = vmatpush2.bf16.msra.mxu0 0
    %129 = vmatprep.mubr.bf16.mxu0 0
    %130 = vmatmul.mubr.bf16.gmra.mxu0 %v91
    %v131 = vpop.f32.mrf.mxu0
    %v132 = vadd.f32 %v87, %v131
    %v133 = vpop.f32.mrf.mxu0
    %v134 = vpop.f32.mrf.mxu0
    %v135 = vpop.f32.mrf.mxu0
    %136 = vdwg.mxu0
    %v137 = vmax.f32 %v132, 0.0
    %v138 = vpack.c.bf16 %v137, %v137
    %v139 = vld [vmem:[#allocation7] sm:$0xf]
    %v140 = vld [vmem:[#allocation7 + $0x4] sm:$0xf]
    %v141 = vld [vmem:[#allocation7 + $0x8] sm:$0xf]
    %v142 = vld [vmem:[#allocation7 + $0xc] sm:$0xf]
    %v143 = vld [vmem:[%s4] sm:$0x1]
    %v145 = vlaneseq
    %v146 = vshrl.u32 %v145, 7
    %v147 = vsub.s32 0, %v146
    %v148 = vrot.slane %v143, %v147
    %v154 = vunpack.c.l.b16 %v139
    %v155 = vunpack.c.l.b16 %v140
    %v156 = vunpack.c.l.b16 %v141
    %v157 = vunpack.c.l.b16 %v142
    %v158 = vpack.c.b16 %v155, %v154
    %v159 = vpack.c.b16 %v157, %v156
    %vm162 = vcmask 261120
    %v164 = vsel %vm162, %v138, 0
    %166 = vmatprep.subr.bf16.mxu0 0
    %167 = vmatpush1.bf16.msra.mxu0 0
    %168 = vmatprep.subr.bf16.mxu0 0
    %169 = vmatpush1.bf16.msra.mxu0 0
    %170 = vmatprep.subr.bf16.mxu0 0
    %171 = vmatpush1.bf16.msra.mxu0 0
    %172 = vmatprep.subr.bf16.mxu0 0
    %173 = vmatpush1.bf16.msra.mxu0 0
    %174 = vmatprep.subr.bf16.mxu0 0
    %175 = vmatpush1.bf16.msra.mxu0 0
    %176 = vmatprep.subr.bf16.mxu0 0
    %177 = vmatpush1.bf16.msra.mxu0 0
    %178 = vmatprep.subr.bf16.mxu0 0
    %179 = vmatpush1.bf16.msra.mxu0 %v159
    %180 = vmatprep.subr.bf16.mxu0 0
    %181 = vmatpush1.bf16.msra.mxu0 %v158
    %182 = vmatprep.subr.bf16.mxu0 0
    %183 = vmatpush2.bf16.msra.mxu0 0
    %184 = vmatprep.subr.bf16.mxu0 0
    %185 = vmatpush2.bf16.msra.mxu0 0
    %186 = vmatprep.subr.bf16.mxu0 0
    %187 = vmatpush2.bf16.msra.mxu0 0
    %188 = vmatprep.subr.bf16.mxu0 0
    %189 = vmatpush2.bf16.msra.mxu0 0
    %190 = vmatprep.subr.bf16.mxu0 0
    %191 = vmatpush2.bf16.msra.mxu0 0
    %192 = vmatprep.subr.bf16.mxu0 0
    %193 = vmatpush2.bf16.msra.mxu0 0
    %194 = vmatprep.subr.bf16.mxu0 0
    %195 = vmatpush2.bf16.msra.mxu0 0
    %196 = vmatprep.subr.bf16.mxu0 0
    %197 = vmatpush2.bf16.msra.mxu0 0
    %198 = vmatprep.mubr.bf16.mxu0 0
    %199 = vmatmul.mubr.bf16.gmra.mxu0 %v164
    %v200 = vpop.f32.mrf.mxu0
    %v201 = vadd.f32 %v148, %v200
    %v202 = vpop.f32.mrf.mxu0
    %v203 = vpop.f32.mrf.mxu0
    %v204 = vpop.f32.mrf.mxu0
    %205 = vdwg.mxu0
    %v206 = vmax.f32 %v201, 0.0
    %v207 = vpack.c.bf16 %v206, %v206
    %v208 = vld [vmem:[#allocation8] sm:$0xf]
    %v209 = vld [vmem:[#allocation8 + $0x4] sm:$0xf]
    %v210 = vld [vmem:[#allocation8 + $0x8] sm:$0xf]
    %v211 = vld [vmem:[#allocation8 + $0xc] sm:$0xf]
    %v212 = vld [vmem:[%s6] sm:$0x1]
    %v214 = vlaneseq
    %v215 = vshrl.u32 %v214, 7
    %v216 = vsub.s32 0, %v215
    %v217 = vrot.slane %v212, %v216
    %v223 = vunpack.c.l.b16 %v208
    %v224 = vunpack.c.l.b16 %v209
    %v225 = vunpack.c.l.b16 %v210
    %v226 = vunpack.c.l.b16 %v211
    %v227 = vpack.c.b16 %v224, %v223
    %v228 = vpack.c.b16 %v226, %v225
    %v232 = vsel %vm162, %v207, 0
    %234 = vmatprep.subr.bf16.mxu0 0
    %235 = vmatpush1.bf16.msra.mxu0 0
    %236 = vmatprep.subr.bf16.mxu0 0
    %237 = vmatpush1.bf16.msra.mxu0 0
    %238 = vmatprep.subr.bf16.mxu0 0
    %239 = vmatpush1.bf16.msra.mxu0 0
    %240 = vmatprep.subr.bf16.mxu0 0
    %241 = vmatpush1.bf16.msra.mxu0 0
    %242 = vmatprep.subr.bf16.mxu0 0
    %243 = vmatpush1.bf16.msra.mxu0 0
    %244 = vmatprep.subr.bf16.mxu0 0
    %245 = vmatpush1.bf16.msra.mxu0 0
    %246 = vmatprep.subr.bf16.mxu0 0
    %247 = vmatpush1.bf16.msra.mxu0 %v228
    %248 = vmatprep.subr.bf16.mxu0 0
    %249 = vmatpush1.bf16.msra.mxu0 %v227
    %250 = vmatprep.subr.bf16.mxu0 0
    %251 = vmatpush2.bf16.msra.mxu0 0
    %252 = vmatprep.subr.bf16.mxu0 0
    %253 = vmatpush2.bf16.msra.mxu0 0
    %254 = vmatprep.subr.bf16.mxu0 0
    %255 = vmatpush2.bf16.msra.mxu0 0
    %256 = vmatprep.subr.bf16.mxu0 0
    %257 = vmatpush2.bf16.msra.mxu0 0
    %258 = vmatprep.subr.bf16.mxu0 0
    %259 = vmatpush2.bf16.msra.mxu0 0
    %260 = vmatprep.subr.bf16.mxu0 0
    %261 = vmatpush2.bf16.msra.mxu0 0
    %262 = vmatprep.subr.bf16.mxu0 0
    %263 = vmatpush2.bf16.msra.mxu0 0
    %264 = vmatprep.subr.bf16.mxu0 0
    %265 = vmatpush2.bf16.msra.mxu0 0
    %266 = vmatprep.mubr.bf16.mxu0 0
    %267 = vmatmul.mubr.bf16.gmra.mxu0 %v232
    %v268 = vpop.f32.mrf.mxu0
    %v269 = vadd.f32 %v217, %v268
    %v270 = vpop.f32.mrf.mxu0
    %v271 = vpop.f32.mrf.mxu0
    %v272 = vpop.f32.mrf.mxu0
    %273 = vdwg.mxu0
    %274 = vst [vmem:[#allocation10] sm:$0xf] %v269
    // Predicated region
    $region46: #{tpu_custom_call.1} parent=1 // pred_check
      _
    $region47: #{tpu_custom_call.1} parent=1 // pred_check_branch
      %276 = sbr.rel (0) target = $region49
    $region48: #{tpu_custom_call.1} parent=1 // pred_region
      %s278 = ssub.s32 64, 64
      %279 = vsyncadd [#allocation4], %s278
      %s281 = sshll.u32 [#allocation10], 4
      %s282 = int_to_ptr.vmem [resolvable:$true] %s281
      %284 = dma.vmem_to_hbm [thread:$0]  %s282, 64, %s7, [#allocation4]
    $region49: #{tpu_custom_call.1} parent=1 // pred_fallthru
      _
    // Predicated region
    $region50: #{tpu_custom_call.1} parent=1 // pred_check
      _
    $region51: #{tpu_custom_call.1} parent=1 // pred_check_branch
      %286 = sbr.rel (0) target = $region53
    $region52: #{tpu_custom_call.1} parent=1 // pred_region
      %287 = dma.done [#allocation4], 64
    $region53: #{tpu_custom_call.1} parent=1 // pred_fallthru
      _
    %288 = vsyncpa [#allocation3], 1
    %289 = vsyncpa [#allocation6], 1
    %290 = vsyncpa [#allocation9], 1
    %291 = vsyncpa [#allocation4], 1

</llo_original>
